<compile_context>
chip_gen: v7x
topology: tpu7x:2x2x1
jax: 0.10.0
libtpu: 0.0.40
codegen_flags: <defaults>
</compile_context>

<pallas_src>
import functools

import jax
import jax.numpy as jnp
from jax import lax
from jax.experimental import pallas as pl
from jax.experimental.pallas import tpu as pltpu


def _round_up(x, m):
    return ((x + m - 1) // m) * m


def _largest_divisor(n, cap, prefer_multiple_of=1):
    """Largest divisor of n that is <= cap, preferring multiples of `prefer_multiple_of`."""
    best = None
    for t in range(min(n, cap), 0, -1):
        if n % t == 0:
            if t % prefer_multiple_of == 0:
                return t
            if best is None:
                best = t
    return best if best is not None else n


def _simclr_kernel(zis_ref, zjs_ref, ce_ref,
                   reps_ref, m_ref, s_ref, pos_ref,
                   *, batch, tr, tc, inv_t):
    i = pl.program_id(0)          # row-tile index (parallel)
    j = pl.program_id(1)          # col-tile index (reduction, last)
    nj = pl.num_programs(1)

    row_start = pl.multiple_of(i * tr, tr)
    col_start = pl.multiple_of(j * tc, tc)

    @pl.when(j == 0)
    def _init():
        # L2-normalize both views and write them into the resident (2B, Dp)
        # scratch (replaces the previous jnp.concatenate).  rsqrt -> EUP slot;
        # eps is squared to match clamp(norm, 1e-12).
        def l2n(x):
            x = x.astype(jnp.float32)
            ssq = jnp.sum(x * x, axis=1, keepdims=True)
            return x * lax.rsqrt(jnp.maximum(ssq, 1e-24))

        reps_ref[pl.ds(0, batch), :] = l2n(zis_ref[...])
        reps_ref[pl.ds(batch, batch), :] = l2n(zjs_ref[...])

        # Online-softmax accumulators for this row tile.
        m_ref[...] = jnp.full((tr, 1), -jnp.inf, jnp.float32)
        s_ref[...] = jnp.zeros((tr, 1), jnp.float32)

        # Positive logit per row in O(tr * D):
        #   rows r <  B : target column = r + 1   (diag-removed indexing quirk)
        #   rows r >= B : target column = r - B
        # Row tiles never straddle the two halves (tr divides B), so the
        # partner rows form ONE contiguous slice of `reps`.
        partner_start = jnp.where(row_start < batch, row_start + 1,
                                  row_start - batch)
        a = reps_ref[pl.ds(row_start, tr), :]
        p = reps_ref[pl.ds(partner_start, tr), :]
        pos_ref[...] = jnp.sum(a * p, axis=1, keepdims=True) * inv_t

    # (tr, tc) similarity tile: contract the LAST dim of both operands
    # (no transpose ever materialized); bf16 MXU inputs, f32 accumulation.
    a = reps_ref[pl.ds(row_start, tr), :].astype(jnp.bfloat16)
    b = reps_ref[pl.ds(col_start, tc), :].astype(jnp.bfloat16)
    sim = lax.dot_general(
        a, b,
        dimension_numbers=(((1,), (1,)), ((), ())),
        preferred_element_type=jnp.float32,
    ) * inv_t

    # Mask the self-similarity diagonal (single (tr,tc) iota + (tr,1) iota).
    lane = lax.broadcasted_iota(jnp.int32, (tr, tc), 1)
    rvec = lax.broadcasted_iota(jnp.int32, (tr, 1), 0)
    sim = jnp.where(lane == rvec + (row_start - col_start),
                    jnp.float32(-1e30), sim)

    # Online logsumexp update.  exp(-1e30 - m_new) underflows to exactly 0,
    # so no second mask is needed for the diagonal terms.
    m_prev = m_ref[...]
    m_new = jnp.maximum(m_prev, jnp.max(sim, axis=1, keepdims=True))
    s_ref[...] = (jnp.exp(m_prev - m_new) * s_ref[...]
                  + jnp.sum(jnp.exp(sim - m_new), axis=1, keepdims=True))
    m_ref[...] = m_new

    @pl.when(j == nj - 1)
    def _finalize():
        lse = m_ref[...] + jnp.log(s_ref[...])
        ce_ref[...] = lse - pos_ref[...]            # per-row cross entropy


def simclr_loss(zis, zjs, temperature=0.5, *, tile_rows=None, tile_cols=None):
    assert zis.shape == zjs.shape and zis.ndim == 2
    batch, dim = zis.shape
    n = 2 * batch

    # Pad the feature dim to the MXU contraction width (multiple of 128);
    # zero padding changes neither norms nor dot products.
    dim_p = _round_up(dim, 128)
    if dim_p != dim:
        pad = [(0, 0), (0, dim_p - dim)]
        zis = jnp.pad(zis, pad)
        zjs = jnp.pad(zjs, pad)

    # Row tiles must not straddle the zis/zjs boundary (tr | batch).
    tr = tile_rows if tile_rows is not None else _largest_divisor(batch, 256, 8)
    tc = tile_cols if tile_cols is not None else _largest_divisor(n, 512, 128)
    if batch % tr or n % tc:
        raise ValueError(f"tile sizes ({tr},{tc}) must divide (batch={batch}, 2*batch={n})")
    grid = (n // tr, n // tc)

    kernel = functools.partial(
        _simclr_kernel, batch=batch, tr=tr, tc=tc, inv_t=float(1.0 / temperature))

    # Scoped-VMEM budget: resident reps scratch + double-buffered inputs +
    # a few (tr,tc) tile temporaries; clamped to keep headroom on v7x (64 MiB).
    est = 4 * n * dim_p + 16 * batch * dim_p + 32 * tr * tc
    vmem_limit = int(min(48 * 2**20, max(32 * 2**20, 2 * est)))

    per_row_ce = pl.pallas_call(
        kernel,
        out_shape=jax.ShapeDtypeStruct((n, 1), jnp.float32),
        grid_spec=pltpu.PrefetchScalarGridSpec(
            num_scalar_prefetch=0,
            grid=grid,
            in_specs=[
                pl.BlockSpec((batch, dim_p), lambda i, j: (0, 0)),   # zis (resident)
                pl.BlockSpec((batch, dim_p), lambda i, j: (0, 0)),   # zjs (resident)
            ],
            out_specs=pl.BlockSpec((tr, 1), lambda i, j: (i, 0)),
            scratch_shapes=[
                pltpu.VMEM((n, dim_p), jnp.float32),   # normalized reps
                pltpu.VMEM((tr, 1), jnp.float32),      # running row max
                pltpu.VMEM((tr, 1), jnp.float32),      # running sum of exp
                pltpu.VMEM((tr, 1), jnp.float32),      # positive logit
            ],
        ),
        compiler_params=pltpu.CompilerParams(
            dimension_semantics=("parallel", "arbitrary"),
            vmem_limit_bytes=vmem_limit,
        ),
    )(zis, zjs)

    # (mean over first B rows + mean over last B rows) / 2  ==  sum / (2B).
    return jnp.sum(per_row_ce) / jnp.float32(n)


def _simclr_loss_ref(zis, zjs, temperature=0.5):
    """Pure-JAX reference mirroring the PyTorch code (f32 everywhere)."""
    B = zis.shape[0]

    def norm(x):
        return x / jnp.maximum(jnp.linalg.norm(x, axis=1, keepdims=True), 1e-12)

    reps = jnp.concatenate([norm(zis), norm(zjs)], axis=0)
    sim = reps @ reps.T
    N = 2 * B
    offdiag = ~jnp.eye(N, dtype=bool)
    sim_red = sim[offdiag].reshape(N, N - 1) / temperature
    target = jnp.arange(B)

    def ce(logits, tgt):
        lse = jax.nn.logsumexp(logits, axis=1)
        return jnp.mean(lse - logits[jnp.arange(logits.shape[0]), tgt])

    return (ce(sim_red[:B], target) + ce(sim_red[B:], target)) / 2.0


if __name__ == "__main__":
    key = jax.random.PRNGKey(0)

    # Test 1: small shapes consistent with the module (B=8, D=32).
    k1, k2 = jax.random.split(key)
    zis = jax.random.normal(k1, (8, 32), dtype=jnp.float32)
    zjs = jax.random.normal(k2, (8, 32), dtype=jnp.float32)
    loss = simclr_loss(zis, zjs, temperature=0.5)
    jax.block_until_ready(loss)
    ref = _simclr_loss_ref(zis, zjs, temperature=0.5)
    assert jnp.allclose(loss, ref, atol=5e-2, rtol=5e-2), (loss, ref)

    # Test 2: exercises multiple row/col tiles, the online logsumexp across
    # column tiles, and the feature-dim zero-padding path.
    k3, k4 = jax.random.split(k2)
    zis2 = jax.random.normal(k3, (16, 40), dtype=jnp.float32)
    zjs2 = jax.random.normal(k4, (16, 40), dtype=jnp.float32)
    loss2 = simclr_loss(zis2, zjs2, temperature=0.5, tile_rows=8, tile_cols=8)
    jax.block_until_ready(loss2)
    ref2 = _simclr_loss_ref(zis2, zjs2, temperature=0.5)
    assert jnp.allclose(loss2, ref2, atol=5e-2, rtol=5e-2), (loss2, ref2)

    print("KERNEL_OK")
</pallas_src>

<mosaic_0001>
module attributes {stable_mosaic.version = 11 : i64} {
  func.func @_simclr_kernel(%arg0: i32, %arg1: i32, %arg2: memref<8x128xf32, #tpu.memory_space<vmem>>, %arg3: memref<8x128xf32, #tpu.memory_space<vmem>>, %arg4: memref<8x1xf32, #tpu.memory_space<vmem>>, %arg5: memref<16x128xf32, #tpu.memory_space<vmem>>, %arg6: memref<8x1xf32, #tpu.memory_space<vmem>>, %arg7: memref<8x1xf32, #tpu.memory_space<vmem>>, %arg8: memref<8x1xf32, #tpu.memory_space<vmem>>) attributes {dimension_semantics = [#tpu.dimension_semantics<parallel>, #tpu.dimension_semantics<arbitrary>], iteration_bounds = array<i64: 2, 1>, scalar_prefetch = 0 : i64, scratch_operands = 4 : i64, tpu.core_type = #tpu.core_type<tc>, window_params = [{pipeline_mode = #tpu.pipeline_mode<synchronous>, transform_indices = @transform_0, window_bounds = array<i64: 8, 128>}, {pipeline_mode = #tpu.pipeline_mode<synchronous>, transform_indices = @transform_1, window_bounds = array<i64: 8, 128>}, {transform_indices = @transform_2, window_bounds = array<i64: 8, 1>}]} {
    %c8_i32 = arith.constant 8 : i32
    %0 = arith.muli %arg0, %c8_i32 : i32
    %1 = tpu.assume_multiple %0, 8 : i32
    %c16_i32 = arith.constant 16 : i32
    %2 = arith.muli %arg1, %c16_i32 : i32
    %3 = tpu.assume_multiple %2, 16 : i32
    %c0_i32 = arith.constant 0 : i32
    %4 = arith.cmpi eq, %arg1, %c0_i32 : i32
    %5 = arith.extui %4 : i1 to i32
    %c0_i32_0 = arith.constant 0 : i32
    %6 = arith.cmpi ne, %5, %c0_i32_0 : i32
    scf.if %6 {
      %c0_16 = arith.constant 0 : index
      %c0_17 = arith.constant 0 : index
      %44 = vector.load %arg2[%c0_16, %c0_17] : memref<8x128xf32, #tpu.memory_space<vmem>>, vector<8x128xf32>
      %45 = arith.mulf %44, %44 : vector<8x128xf32>
      %cst_18 = arith.constant dense<0.000000e+00> : vector<8xf32>
      %46 = vector.multi_reduction <add>, %45, %cst_18 [1] : vector<8x128xf32> to vector<8xf32>
      %47 = vector.shape_cast %46 : vector<8xf32> to vector<8x1xf32>
      %cst_19 = arith.constant 1.000000e-24 : f32
      %48 = vector.broadcast %cst_19 : f32 to vector<8x1xf32>
      %49 = arith.maximumf %47, %48 : vector<8x1xf32>
      %50 = math.rsqrt %49 : vector<8x1xf32>
      %51 = vector.broadcast %50 : vector<8x1xf32> to vector<8x128xf32>
      %52 = arith.mulf %44, %51 : vector<8x128xf32>
      %c0_20 = arith.constant 0 : index
      %c0_21 = arith.constant 0 : index
      %53 = vector.load %arg5[%c0_20, %c0_21] : memref<16x128xf32, #tpu.memory_space<vmem>>, vector<8x128xf32>
      tpu.vector_store %arg5[%c0_20, %c0_21], %52 {strides = array<i32>} : memref<16x128xf32, #tpu.memory_space<vmem>>, vector<8x128xf32>,
      %c0_22 = arith.constant 0 : index
      %c0_23 = arith.constant 0 : index
      %54 = vector.load %arg3[%c0_22, %c0_23] : memref<8x128xf32, #tpu.memory_space<vmem>>, vector<8x128xf32>
      %55 = arith.mulf %54, %54 : vector<8x128xf32>
      %cst_24 = arith.constant dense<0.000000e+00> : vector<8xf32>
      %56 = vector.multi_reduction <add>, %55, %cst_24 [1] : vector<8x128xf32> to vector<8xf32>
      %57 = vector.shape_cast %56 : vector<8xf32> to vector<8x1xf32>
      %cst_25 = arith.constant 1.000000e-24 : f32
      %58 = vector.broadcast %cst_25 : f32 to vector<8x1xf32>
      %59 = arith.maximumf %57, %58 : vector<8x1xf32>
      %60 = math.rsqrt %59 : vector<8x1xf32>
      %61 = vector.broadcast %60 : vector<8x1xf32> to vector<8x128xf32>
      %62 = arith.mulf %54, %61 : vector<8x128xf32>
      %c8 = arith.constant 8 : index
      %c0_26 = arith.constant 0 : index
      %63 = vector.load %arg5[%c8, %c0_26] : memref<16x128xf32, #tpu.memory_space<vmem>>, vector<8x128xf32>
      tpu.vector_store %arg5[%c8, %c0_26], %62 {strides = array<i32>} : memref<16x128xf32, #tpu.memory_space<vmem>>, vector<8x128xf32>,
      %cst_27 = arith.constant 0xFF800000 : f32
      %64 = vector.broadcast %cst_27 : f32 to vector<8x1xf32>
      %c0_28 = arith.constant 0 : index
      %c0_29 = arith.constant 0 : index
      %65 = vector.load %arg6[%c0_28, %c0_29] : memref<8x1xf32, #tpu.memory_space<vmem>>, vector<8x1xf32>
      tpu.vector_store %arg6[%c0_28, %c0_29], %64 {strides = array<i32>} : memref<8x1xf32, #tpu.memory_space<vmem>>, vector<8x1xf32>,
      %cst_30 = arith.constant 0.000000e+00 : f32
      %66 = vector.broadcast %cst_30 : f32 to vector<8x1xf32>
      %c0_31 = arith.constant 0 : index
      %c0_32 = arith.constant 0 : index
      %67 = vector.load %arg7[%c0_31, %c0_32] : memref<8x1xf32, #tpu.memory_space<vmem>>, vector<8x1xf32>
      tpu.vector_store %arg7[%c0_31, %c0_32], %66 {strides = array<i32>} : memref<8x1xf32, #tpu.memory_space<vmem>>, vector<8x1xf32>,
      %c8_i32_33 = arith.constant 8 : i32
      %68 = arith.cmpi slt, %1, %c8_i32_33 : i32
      %c1_i32 = arith.constant 1 : i32
      %69 = arith.addi %1, %c1_i32 : i32
      %c8_i32_34 = arith.constant 8 : i32
      %70 = arith.subi %1, %c8_i32_34 : i32
      %71 = arith.select %68, %69, %70 : i32
      %72 = arith.index_cast %1 : i32 to index
      %c0_35 = arith.constant 0 : index
      %73 = vector.load %arg5[%72, %c0_35] : memref<16x128xf32, #tpu.memory_space<vmem>>, vector<8x128xf32>
      %74 = arith.index_cast %71 : i32 to index
      %c0_36 = arith.constant 0 : index
      %75 = vector.load %arg5[%74, %c0_36] : memref<16x128xf32, #tpu.memory_space<vmem>>, vector<8x128xf32>
      %76 = arith.mulf %73, %75 : vector<8x128xf32>
      %cst_37 = arith.constant dense<0.000000e+00> : vector<8xf32>
      %77 = vector.multi_reduction <add>, %76, %cst_37 [1] : vector<8x128xf32> to vector<8xf32>
      %78 = vector.shape_cast %77 : vector<8xf32> to vector<8x1xf32>
      %cst_38 = arith.constant 2.000000e+00 : f32
      %79 = vector.broadcast %cst_38 : f32 to vector<8x1xf32>
      %80 = arith.mulf %78, %79 : vector<8x1xf32>
      %c0_39 = arith.constant 0 : index
      %c0_40 = arith.constant 0 : index
      %81 = vector.load %arg8[%c0_39, %c0_40] : memref<8x1xf32, #tpu.memory_space<vmem>>, vector<8x1xf32>
      tpu.vector_store %arg8[%c0_39, %c0_40], %80 {strides = array<i32>} : memref<8x1xf32, #tpu.memory_space<vmem>>, vector<8x1xf32>,
    } else {
    }
    %7 = arith.index_cast %1 : i32 to index
    %c0 = arith.constant 0 : index
    %8 = vector.load %arg5[%7, %c0] : memref<16x128xf32, #tpu.memory_space<vmem>>, vector<8x128xf32>
    %9 = arith.truncf %8 : vector<8x128xf32> to vector<8x128xbf16>
    %10 = arith.index_cast %3 : i32 to index
    %c0_1 = arith.constant 0 : index
    %11 = vector.load %arg5[%10, %c0_1] : memref<16x128xf32, #tpu.memory_space<vmem>>, vector<16x128xf32>
    %12 = arith.truncf %11 : vector<16x128xf32> to vector<16x128xbf16>
    %cst = arith.constant dense<0.000000e+00> : vector<8x16xf32>
    %13 = tpu.matmul %9, %12, %cst {dimension_numbers = #tpu.dot_dimension_numbers<[1], [1], [0], [0], [0, 0, 1, 0], [], []>} : vector<8x128xbf16>, vector<16x128xbf16>, vector<8x16xf32> -> vector<8x16xf32>
    %cst_2 = arith.constant 2.000000e+00 : f32
    %14 = vector.broadcast %cst_2 : f32 to vector<8x16xf32>
    %15 = arith.mulf %13, %14 : vector<8x16xf32>
    %16 = tpu.iota {dimensions = array<i32: 1>} : vector<8x16xi32>
    %17 = tpu.iota {dimensions = array<i32: 0>} : vector<8x1xi32>
    %18 = arith.subi %1, %3 : i32
    %19 = vector.broadcast %18 : i32 to vector<8x1xi32>
    %20 = arith.addi %17, %19 : vector<8x1xi32>
    %21 = vector.broadcast %20 : vector<8x1xi32> to vector<8x16xi32>
    %22 = arith.cmpi eq, %16, %21 : vector<8x16xi32>
    %cst_3 = arith.constant -1.000000e+30 : f32
    %23 = vector.broadcast %cst_3 : f32 to vector<8x16xf32>
    %24 = arith.select %22, %23, %15 : vector<8x16xi1>, vector<8x16xf32>
    %c0_4 = arith.constant 0 : index
    %c0_5 = arith.constant 0 : index
    %25 = vector.load %arg6[%c0_4, %c0_5] : memref<8x1xf32, #tpu.memory_space<vmem>>, vector<8x1xf32>
    %cst_6 = arith.constant dense<0xFF800000> : vector<8xf32>
    %26 = vector.multi_reduction <maximumf>, %24, %cst_6 [1] : vector<8x16xf32> to vector<8xf32>
    %27 = vector.shape_cast %26 : vector<8xf32> to vector<8x1xf32>
    %28 = arith.maximumf %25, %27 : vector<8x1xf32>
    %29 = arith.subf %25, %28 : vector<8x1xf32>
    %30 = math.exp %29 : vector<8x1xf32>
    %c0_7 = arith.constant 0 : index
    %c0_8 = arith.constant 0 : index
    %31 = vector.load %arg7[%c0_7, %c0_8] : memref<8x1xf32, #tpu.memory_space<vmem>>, vector<8x1xf32>
    %32 = arith.mulf %30, %31 : vector<8x1xf32>
    %33 = vector.broadcast %28 : vector<8x1xf32> to vector<8x16xf32>
    %34 = arith.subf %24, %33 : vector<8x16xf32>
    %35 = math.exp %34 : vector<8x16xf32>
    %cst_9 = arith.constant dense<0.000000e+00> : vector<8xf32>
    %36 = vector.multi_reduction <add>, %35, %cst_9 [1] : vector<8x16xf32> to vector<8xf32>
    %37 = vector.shape_cast %36 : vector<8xf32> to vector<8x1xf32>
    %38 = arith.addf %32, %37 : vector<8x1xf32>
    %c0_10 = arith.constant 0 : index
    %c0_11 = arith.constant 0 : index
    %39 = vector.load %arg7[%c0_10, %c0_11] : memref<8x1xf32, #tpu.memory_space<vmem>>, vector<8x1xf32>
    tpu.vector_store %arg7[%c0_10, %c0_11], %38 {strides = array<i32>} : memref<8x1xf32, #tpu.memory_space<vmem>>, vector<8x1xf32>,
    %c0_12 = arith.constant 0 : index
    %c0_13 = arith.constant 0 : index
    %40 = vector.load %arg6[%c0_12, %c0_13] : memref<8x1xf32, #tpu.memory_space<vmem>>, vector<8x1xf32>
    tpu.vector_store %arg6[%c0_12, %c0_13], %28 {strides = array<i32>} : memref<8x1xf32, #tpu.memory_space<vmem>>, vector<8x1xf32>,
    %c0_i32_14 = arith.constant 0 : i32
    %41 = arith.cmpi eq, %arg1, %c0_i32_14 : i32
    %42 = arith.extui %41 : i1 to i32
    %c0_i32_15 = arith.constant 0 : i32
    %43 = arith.cmpi ne, %42, %c0_i32_15 : i32
    scf.if %43 {
      %c0_16 = arith.constant 0 : index
      %c0_17 = arith.constant 0 : index
      %44 = vector.load %arg6[%c0_16, %c0_17] : memref<8x1xf32, #tpu.memory_space<vmem>>, vector<8x1xf32>
      %c0_18 = arith.constant 0 : index
      %c0_19 = arith.constant 0 : index
      %45 = vector.load %arg7[%c0_18, %c0_19] : memref<8x1xf32, #tpu.memory_space<vmem>>, vector<8x1xf32>
      %46 = math.log %45 : vector<8x1xf32>
      %47 = arith.addf %44, %46 : vector<8x1xf32>
      %c0_20 = arith.constant 0 : index
      %c0_21 = arith.constant 0 : index
      %48 = vector.load %arg8[%c0_20, %c0_21] : memref<8x1xf32, #tpu.memory_space<vmem>>, vector<8x1xf32>
      %49 = arith.subf %47, %48 : vector<8x1xf32>
      %c0_22 = arith.constant 0 : index
      %c0_23 = arith.constant 0 : index
      %50 = vector.load %arg4[%c0_22, %c0_23] : memref<8x1xf32, #tpu.memory_space<vmem>>, vector<8x1xf32>
      tpu.vector_store %arg4[%c0_22, %c0_23], %49 {strides = array<i32>} : memref<8x1xf32, #tpu.memory_space<vmem>>, vector<8x1xf32>,
    } else {
    }
    return
  }
  func.func @transform_0(%arg0: i32, %arg1: i32) -> (i32, i32) {
    %c0_i32 = arith.constant 0 : i32
    %c0_i32_0 = arith.constant 0 : i32
    %c0_i32_1 = arith.constant 0 : i32
    return %c0_i32, %c0_i32_0 : i32, i32
  }
  func.func @transform_1(%arg0: i32, %arg1: i32) -> (i32, i32) {
    %c0_i32 = arith.constant 0 : i32
    %c0_i32_0 = arith.constant 0 : i32
    %c0_i32_1 = arith.constant 0 : i32
    return %c0_i32, %c0_i32_0 : i32, i32
  }
  func.func @transform_2(%arg0: i32, %arg1: i32) -> (i32, i32) {
    %c0_i32 = arith.constant 0 : i32
    %c0_i32_0 = arith.constant 0 : i32
    return %arg0, %c0_i32 : i32, i32
  }
}

</mosaic_0001>

<llo_original>
// kernel: tpu_custom_call.1
$region0: #{tpu_custom_call.1}
  #allocation0 [shape = 'u32[]', space=smem, size = 0x4, offset = 0x4, fixed_abs, tag = 'smem constant byte address 0x4 - core index']
  #allocation1 [shape = 'u32[144,128]{1,0:T(1,128)}', space=vmem, size = 0x12000, scoped, tag = 'internal scratch']
  #allocation2 [shape = 'f32[16,128]{1,0:T(8,128)}', space=vmem, size = 0x2000, scoped, tag = 'scratch operand']
  #allocation3 [shape = 'f32[8,1]{1,0:T(8,128)}', space=vmem, size = 0x1000, scoped, tag = 'scratch operand']
  #allocation4 [shape = 'f32[8,1]{1,0:T(8,128)}', space=vmem, size = 0x1000, scoped, tag = 'scratch operand']
  #allocation5 [shape = 'f32[8,1]{1,0:T(8,128)}', space=vmem, size = 0x1000, scoped, tag = 'scratch operand']
  %s0 = inlined_call_operand.hbm [shape: f32[8,128], index: 0, kind: input, shape index: {}]
  %s1 = inlined_call_operand.hbm [shape: f32[8,128], index: 1, kind: input, shape index: {}]
  %s2 = inlined_call_operand.vmem [shape: f32[16,1], index: 2, kind: output, shape index: {}]
  %s3 = sld [smem:[#allocation0]]
  $region57: #{tpu_custom_call.1} parent=0
    _
  %s5 = ssub.s32 1, %s3
  %s6 = scalar_select 0, %s5, %s3
  $region1: #{tpu_custom_call.1} parent=0
    #allocation6 [shape = 'u8[4096]{0}', space=vmem, size = 0x1000, scoped, tag = 'input window, operand 0, single buffered']
    #allocation7 [shape = 's32[2]{0}', space=sflag, size = 0x8, scoped, tag = 'scoped memory for tpu_custom_call.1']
    #allocation8 [shape = 'u8[4096]{0}', space=vmem, size = 0x1000, scoped, tag = 'input window, operand 1, single buffered']
    #allocation9 [shape = 's32[1]{0}', space=sflag, size = 0x4, scoped, tag = 'scoped memory for tpu_custom_call.1']
    %7 = vsyncpa [#allocation7], 0
    %8 = vsyncpa [#allocation9], 0
    loop: start=0, step=1, limit=4
    $region2: #{tpu_custom_call.1} parent=1 // loop_pre_header
      _
    $region3: #{tpu_custom_call.1} parent=1 // loop_header
      %s10 = sphi 0, %s14
      %p11 = scmp.ge.s32.totalorder %s10, 4
      %s17 = sphi 0, %s29
      %s18 = sphi 0, %s25
      %s19 = sphi 0, %s17
      %s20 = sphi 0, %s18
      %s21 = sphi 0, %s19
      %s22 = sphi 0, %s20
      %s30 = sphi 0, %s30
      %s32 = sphi 0, %s30
      %s33 = sphi 0, %s32
      %s47 = sphi 0, %s33
      %s51 = sphi 0, %s51
      %s53 = sphi 0, %s51
      %s54 = sphi 0, %s53
      %s68 = sphi 0, %s54
      %s74 = sphi 0, %s76
      %s77 = sphi 0, %s74
      %s78 = sphi 0, %s77
      %s94 = sphi 0, %s78
    $region4: #{tpu_custom_call.1} parent=1 // loop_header_branch
      %13 = sbr.rel (%p11) target = $region8
    $region5: #{tpu_custom_call.1} parent=1 // loop_body
      %s15 = ssub.s32 %s10, 1
      %s16 = ssub.s32 %s10, 2
      %s23 = sadd.s32 1, %s18
      %p24 = scmp.ge.s32.totalorder %s23, 1
      %s25 = scalar_select %p24, 0, %s23
      %s26 = sadd.s32 1, %s17
      %s27 = scalar_select %p24, %s26, %s17
      %p28 = scmp.ge.s32.totalorder %s27, 2
      %s29 = scalar_select %p28, 0, %s27
      %s31 = sadd.s32 %s30, 1
      %p34 = scmp.eq.s32.totalorder %s10, 1
      %p35 = scmp.ne.s32.totalorder %s30, %s32
      %p36 = scmp.eq.s32.totalorder %s10, 0
      %p37 = por %p35, %p36
      %p38 = scmp.ne.s32.totalorder %s30, %s32
      %p39 = scmp.eq.s32.totalorder %s15, 1
      %p40 = por %p38, %p39
      %p41 = scmp.ne.s32.totalorder %s32, %s33
      %p42 = scmp.eq.s32.totalorder %s15, 0
      %p43 = por %p41, %p42
      %p44 = scmp.ne.s32.totalorder %s32, %s33
      %p45 = scmp.eq.s32.totalorder %s16, 1
      %p46 = por %p44, %p45
      %p48 = scmp.ne.s32.totalorder %s33, %s47
      %p49 = scmp.eq.s32.totalorder %s16, 0
      %p50 = por %p48, %p49
      %s52 = sadd.s32 %s51, 1
      %p55 = scmp.eq.s32.totalorder %s10, 1
      %p56 = scmp.ne.s32.totalorder %s51, %s53
      %p57 = scmp.eq.s32.totalorder %s10, 0
      %p58 = por %p56, %p57
      %p59 = scmp.ne.s32.totalorder %s51, %s53
      %p60 = scmp.eq.s32.totalorder %s15, 1
      %p61 = por %p59, %p60
      %p62 = scmp.ne.s32.totalorder %s53, %s54
      %p63 = scmp.eq.s32.totalorder %s15, 0
      %p64 = por %p62, %p63
      %p65 = scmp.ne.s32.totalorder %s53, %s54
      %p66 = scmp.eq.s32.totalorder %s16, 1
      %p67 = por %p65, %p66
      %p69 = scmp.ne.s32.totalorder %s54, %s68
      %p70 = scmp.eq.s32.totalorder %s16, 0
      %p71 = por %p69, %p70
      %s72 = ssub.s32 %s17, %s29
      %p73 = scmp.eq.s32.totalorder %s72, 0
      %s75 = sadd.s32 %s74, 1
      %s76 = scalar_select %p73, %s74, %s75
      %p79 = pneg %p73
      %p80 = scmp.eq.s32.totalorder %s10, 1
      %p81 = por %p79, %p80
      %p82 = scmp.ne.s32.totalorder %s74, %s77
      %p83 = scmp.eq.s32.totalorder %s10, 0
      %p84 = por %p82, %p83
      %p85 = scmp.ne.s32.totalorder %s74, %s77
      %p86 = scmp.eq.s32.totalorder %s15, 1
      %p87 = por %p85, %p86
      %p88 = scmp.ne.s32.totalorder %s77, %s78
      %p89 = scmp.eq.s32.totalorder %s15, 0
      %p90 = por %p88, %p89
      %p91 = scmp.ne.s32.totalorder %s77, %s78
      %p92 = scmp.eq.s32.totalorder %s16, 1
      %p93 = por %p91, %p92
      %p95 = scmp.ne.s32.totalorder %s78, %s94
      %p96 = scmp.eq.s32.totalorder %s16, 0
      %p97 = por %p95, %p96
      %p98 = scmp.le.s32.totalorder 1, %s10
      %p99 = scmp.lt.s32.totalorder %s10, 3
      %p100 = pnand %p98, %p99
      %p101 = pneg %p100
      // Predicated region
      $region9: #{tpu_custom_call.1} parent=5 // pred_check
        _
      $region10: #{tpu_custom_call.1} parent=5 // pred_check_branch
        %103 = sbr.rel (%p100) target = $region12
      $region11: #{tpu_custom_call.1} parent=5 // pred_region
        %s104 = ssub.s32 %s10, 1
        // Predicated region
        $region13: #{tpu_custom_call.1} parent=11 // pred_check
          %p105 = pneg %p43
        $region14: #{tpu_custom_call.1} parent=11 // pred_check_branch
          %107 = sbr.rel (%p105) target = $region16
        $region15: #{tpu_custom_call.1} parent=11 // pred_region
          %s109 = ssub.s32 128, 128
          %110 = vsyncadd [#allocation7], %s109
          %s112 = sshll.u32 [#allocation6], 4
          %s113 = int_to_ptr.vmem [resolvable:$true] %s112
          %115 = dma.hbm_to_vmem [thread:$0]  %s0, 128, %s113, [#allocation7]
        $region16: #{tpu_custom_call.1} parent=11 // pred_fallthru
          _
        // Predicated region
        $region17: #{tpu_custom_call.1} parent=11 // pred_check
          %p116 = pneg %p64
        $region18: #{tpu_custom_call.1} parent=11 // pred_check_branch
          %118 = sbr.rel (%p116) target = $region20
        $region19: #{tpu_custom_call.1} parent=11 // pred_region
          %s120 = ssub.s32 128, 128
          %121 = vsyncadd [#allocation9], %s120
          %s123 = sshll.u32 [#allocation8], 4
          %s124 = int_to_ptr.vmem [resolvable:$true] %s123
          %126 = dma.hbm_to_vmem [thread:$0]  %s1, 128, %s124, [#allocation9]
        $region20: #{tpu_custom_call.1} parent=11 // pred_fallthru
          _
      $region12: #{tpu_custom_call.1} parent=5 // pred_fallthru
        _
      %p127 = scmp.lt.s32.totalorder %s10, 2
      // Predicated region
      $region21: #{tpu_custom_call.1} parent=5 // pred_check
        %p128 = pneg %p127
      $region22: #{tpu_custom_call.1} parent=5 // pred_check_branch
        %130 = sbr.rel (%p128) target = $region24
      $region23: #{tpu_custom_call.1} parent=5 // pred_region
        _
      $region24: #{tpu_custom_call.1} parent=5 // pred_fallthru
        _
      %p131 = scmp.le.s32.totalorder 1, %s10
      %p132 = scmp.lt.s32.totalorder %s10, 3
      %p133 = pnand %p131, %p132
      %p134 = pneg %p133
      // Predicated region
      $region25: #{tpu_custom_call.1} parent=5 // pred_check
        _
      $region26: #{tpu_custom_call.1} parent=5 // pred_check_branch
        %136 = sbr.rel (%p133) target = $region28
      $region27: #{tpu_custom_call.1} parent=5 // pred_region
        %s137 = ssub.s32 %s10, 1
        // Predicated region
        $region29: #{tpu_custom_call.1} parent=27 // pred_check
          %p138 = pneg %p43
        $region30: #{tpu_custom_call.1} parent=27 // pred_check_branch
          %140 = sbr.rel (%p138) target = $region32
        $region31: #{tpu_custom_call.1} parent=27 // pred_region
          %141 = dma.done [#allocation7], 128
        $region32: #{tpu_custom_call.1} parent=27 // pred_fallthru
          _
        // Predicated region
        $region33: #{tpu_custom_call.1} parent=27 // pred_check
          %p142 = pneg %p64
        $region34: #{tpu_custom_call.1} parent=27 // pred_check_branch
          %144 = sbr.rel (%p142) target = $region36
        $region35: #{tpu_custom_call.1} parent=27 // pred_region
          %145 = dma.done [#allocation9], 128
        $region36: #{tpu_custom_call.1} parent=27 // pred_fallthru
          _
        %p146 = pneg %p43
        %p147 = pneg %p40
        %p148 = pneg %p64
        %p149 = pneg %p61
        %p150 = pneg %p90
        %p151 = pneg %p87
        %p152 = scmp.lt.s32.totalorder %s19, 1
        %s153 = scalar_select %p152, %s19, 1
        %s154 = smul.addr %s153, 8
        %s155 = scalar_lea.vmem %s2, %s154
        %p156 = scmp.lt.s32.totalorder %s19, 1
        %s157 = scalar_select %p156, %s19, 1
        %s158 = smul.addr %s157, 8
        %s159 = scalar_lea.vmem %s2, %s158
        %s161 = smul.u32 %s19, 8
        %s162 = smul.u32 %s20, 16
        %p163 = scmp.eq.s32.totalorder %s20, 0
        // Predicated region
        $region37: #{tpu_custom_call.1} parent=27 // pred_check
          %p164 = pneg %p163
        $region38: #{tpu_custom_call.1} parent=27 // pred_check_branch
          %166 = sbr.rel (%p164) target = $region40
        $region39: #{tpu_custom_call.1} parent=27 // pred_region
          %v167 = vld [vmem:[#allocation6] sm:$0xff]
          %v168 = vmul.f32 %v167, %v167
          %169 = vadd.xlane.f32.xlu0 %v168
          %v170 = vpop.xlane.xlu0 %169
          %v171 = vmax.f32 %v170, 1e-24
          %v172 = vrsqrt.pop %v171
          %v173 = vmul.f32 %v167, %v172
          %174 = vst [vmem:[#allocation2] sm:$0xff] %v173
          %v175 = vld [vmem:[#allocation8] sm:$0xff]
          %v176 = vmul.f32 %v175, %v175
          %177 = vadd.xlane.f32.xlu0 %v176
          %v178 = vpop.xlane.xlu0 %177
          %v179 = vmax.f32 %v178, 1e-24
          %v180 = vrsqrt.pop %v179
          %v181 = vmul.f32 %v175, %v180
          %182 = vst [vmem:[#allocation2 + $0x8] sm:$0xff] %v181
          %vm183 = vcmask 7168
          %184 = vst.msk [vmem:[#allocation3] sm:$0xff] %vm183, -inf
          %185 = vst.msk [vmem:[#allocation4] sm:$0xff] %vm183, 0.0
          %p186 = scmp.lt.s32.totalorder %s161, 8
          %s187 = sadd.s32 %s161, 1
          %s188 = ssub.s32 %s161, 8
          %s189 = scalar_select %p186, %s187, %s188
          %s190 = scalar_lea.vmem [#allocation2], %s161
          %v191 = vld [vmem:[%s190] sm:$0xff]
          %s192 = scalar_lea.vmem [#allocation2], %s189
          %v193 = vld [vmem:[%s192] sm:$0xff]
          %v194 = vmul.f32 %v191, %v193
          %195 = vadd.xlane.f32.xlu0 %v194
          %v196 = vpop.xlane.xlu0 %195
          %v197 = vmul.f32 %v196, 2.0
          %198 = vst.msk [vmem:[#allocation5] sm:$0xff] %vm183, %v197
        $region40: #{tpu_custom_call.1} parent=27 // pred_fallthru
          _
        %s199 = scalar_lea.vmem [#allocation2], %s161
        %v200 = vld [vmem:[%s199] sm:$0xff]
        %v201 = vpack.c.bf16 %v200, %v200
        %s202 = scalar_lea.vmem [#allocation2], %s162
        %v203 = vld [vmem:[%s202] sm:$0xff]
        %v204 = vld [vmem:[%s202 + $0x8] sm:$0xff]
        %v205 = vpack.c.bf16 %v204, %v203
        %206 = vmatprep.subr.bf16.mxu0 0
        %207 = vmatpush1.bf16.xpose.msra.mxu0 %v205
        %208 = vmatprep.subr.bf16.mxu0 0
        %209 = vmatpush1.bf16.xpose.msra.mxu0 0
        %210 = vmatprep.subr.bf16.mxu0 0
        %211 = vmatpush1.bf16.xpose.msra.mxu0 0
        %212 = vmatprep.subr.bf16.mxu0 0
        %213 = vmatpush1.bf16.xpose.msra.mxu0 0
        %214 = vmatprep.subr.bf16.mxu0 0
        %215 = vmatpush1.bf16.xpose.msra.mxu0 0
        %216 = vmatprep.subr.bf16.mxu0 0
        %217 = vmatpush1.bf16.xpose.msra.mxu0 0
        %218 = vmatprep.subr.bf16.mxu0 0
        %219 = vmatpush1.bf16.xpose.msra.mxu0 0
        %220 = vmatprep.subr.bf16.mxu0 0
        %221 = vmatpush1.bf16.xpose.msra.mxu0 0
        %222 = vmatprep.subr.bf16.mxu0 0
        %223 = vmatpush1.bf16.xpose.msra.mxu0 0
        %224 = vmatprep.subr.bf16.mxu0 0
        %225 = vmatpush1.bf16.xpose.msra.mxu0 0
        %226 = vmatprep.subr.bf16.mxu0 0
        %227 = vmatpush1.bf16.xpose.msra.mxu0 0
        %228 = vmatprep.subr.bf16.mxu0 0
        %229 = vmatpush1.bf16.xpose.msra.mxu0 0
        %230 = vmatprep.subr.bf16.mxu0 0
        %231 = vmatpush1.bf16.xpose.msra.mxu0 0
        %232 = vmatprep.subr.bf16.mxu0 0
        %233 = vmatpush1.bf16.xpose.msra.mxu0 0
        %234 = vmatprep.subr.bf16.mxu0 0
        %235 = vmatpush1.bf16.xpose.msra.mxu0 0
        %236 = vmatprep.subr.bf16.mxu0 0
        %237 = vmatpush1.bf16.xpose.msra.mxu0 0
        %238 = vmatprep.mubr.bf16.mxu0 0
        %239 = vmatmul.mubr.bf16.gmra.mrb[0].mxu0 %v201
        %v240 = vpop.f32.mrb[0].mxu0
        %v241 = vadd.f32 0.0, %v240
        %v242 = vpop.f32.mrb[0].mxu0
        %v243 = vpop.f32.mrb[0].mxu0
        %v244 = vpop.f32.mrb[0].mxu0
        %245 = vdwg.mxu0
        %v246 = vmul.f32 %v241, 2.0
        %v247 = vlaneseq
        %v248 = vand.u32 %v247, 127
        %v249 = vlaneseq
        %v250 = vshrl.u32 %v249, 7
        %s251 = ssub.s32 %s161, %s162
        %v252 = vstv %s251
        %v253 = vadd.s32 %v250, %v252
        %vm254 = vcmp.eq.s32.totalorder %v248, %v253
        %v255 = vsel %vm254, -1e+30, %v246
        %v256 = vld [vmem:[#allocation3] sm:$0xff]
        %vm257 = vcmask 130048
        %v258 = vsel %vm257, %v255, -inf
        %259 = vmax.xlane.f32.xlu0 %v258
        %v260 = vpop.xlane.xlu0 %259
        %v261 = vmax.f32 %v256, %v260
        %v262 = vsub.f32 %v256, %v261
        %v263 = vmul.f32 %v262, 1.442695
        %v264 = vpow.pop %v263
        %v265 = vld [vmem:[#allocation4] sm:$0xff]
        %v266 = vmul.f32 %v264, %v265
        %268 = vset.pattern.permute.xlu0 0
        %269 = vperm.xlu0 %268, %v261
        %v270 = vpop.permute.xlu0 %269
        %v272 = vsub.f32 %v255, %v270
        %v273 = vmul.f32 %v272, 1.442695
        %v274 = vpow.pop %v273
        %v275 = vsel %vm257, %v274, 0.0
        %276 = vadd.xlane.f32.xlu0 %v275
        %v277 = vpop.xlane.xlu0 %276
        %v278 = vadd.f32 %v266, %v277
        %vm279 = vcmask 7168
        %280 = vst.msk [vmem:[#allocation4] sm:$0xff] %vm279, %v278
        %281 = vst.msk [vmem:[#allocation3] sm:$0xff] %vm279, %v261
        // Predicated region
        $region41: #{tpu_custom_call.1} parent=27 // pred_check
          %p282 = pneg %p163
        $region42: #{tpu_custom_call.1} parent=27 // pred_check_branch
          %284 = sbr.rel (%p282) target = $region44
        $region43: #{tpu_custom_call.1} parent=27 // pred_region
          %v285 = vld [vmem:[#allocation3] sm:$0xff]
          %v286 = vld [vmem:[#allocation4] sm:$0xff]
          %v287 = vlog2.pop %v286
          %v288 = vmul.f32 %v287, 0.6931472
          %v289 = vadd.f32 %v285, %v288
          %v290 = vld [vmem:[#allocation5] sm:$0xff]
          %v291 = vsub.f32 %v289, %v290
          %292 = vst.msk [vmem:[%s159] sm:$0xff] %vm279, %v291
        $region44: #{tpu_custom_call.1} parent=27 // pred_fallthru
          _
        %p293 = scmp.lt.s32.totalorder %s19, 1
        %s294 = scalar_select %p293, %s19, 1
        %s295 = smul.addr %s294, 8
        %s296 = scalar_lea.vmem %s2, %s295
        // Predicated region
        $region45: #{tpu_custom_call.1} parent=27 // pred_check
          %p297 = pneg %p87
        $region46: #{tpu_custom_call.1} parent=27 // pred_check_branch
          %299 = sbr.rel (%p297) target = $region48
        $region47: #{tpu_custom_call.1} parent=27 // pred_region
          _
        $region48: #{tpu_custom_call.1} parent=27 // pred_fallthru
          _
      $region28: #{tpu_custom_call.1} parent=5 // pred_fallthru
        _
      %p300 = scmp.le.s32.totalorder 2, %s10
      // Predicated region
      $region49: #{tpu_custom_call.1} parent=5 // pred_check
        %p301 = pneg %p300
      $region50: #{tpu_custom_call.1} parent=5 // pred_check_branch
        %303 = sbr.rel (%p301) target = $region52
      $region51: #{tpu_custom_call.1} parent=5 // pred_region
        %s304 = ssub.s32 %s10, 2
        // Predicated region
        $region53: #{tpu_custom_call.1} parent=51 // pred_check
          %p305 = pneg %p93
        $region54: #{tpu_custom_call.1} parent=51 // pred_check_branch
          %307 = sbr.rel (%p305) target = $region56
        $region55: #{tpu_custom_call.1} parent=51 // pred_region
          %p308 = scmp.lt.s32.totalorder %s21, 1
          %s309 = scalar_select %p308, %s21, 1
          %s310 = smul.addr %s309, 8
          %s311 = scalar_lea.vmem %s2, %s310
        $region56: #{tpu_custom_call.1} parent=51 // pred_fallthru
          _
      $region52: #{tpu_custom_call.1} parent=5 // pred_fallthru
        _
    $region6: #{tpu_custom_call.1} parent=1 // loop_footer
      %s14 = sadd.s32 1, %s10
    $region7: #{tpu_custom_call.1} parent=1 // loop_footer_branch
      %9 = sbr.rel target = $region3
    $region8: #{tpu_custom_call.1} parent=1 // loop_exit
      _
    %312 = vsyncpa [#allocation7], 1
    %s313 = scalar_lea.sflag [#allocation7], 1
    %314 = vsyncpa %s313, 1
    %315 = vsyncpa [#allocation9], 1

</llo_original>
